<compile_context>
chip_gen: v5e
topology: v5e:2x2
jax: 0.10.0
libtpu: 0.0.40
codegen_flags: <defaults>
</compile_context>

<pallas_src>
import functools

import jax
import jax.numpy as jnp
import numpy as np
from jax.experimental import pallas as pl
from jax.experimental.pallas import tpu as pltpu


def _round_up(x, m):
    return (x + m - 1) // m * m


def _cdiv(a, b):
    return -(-a // b)


def _vmem_capacity_bytes():
    """Physical VMEM per TensorCore; conservative 64 MiB (v7x) fallback."""
    try:
        info = pltpu.get_tpu_info()
        for name in ("vmem_capacity_bytes", "vmem_bytes", "vmem_size_bytes"):
            v = getattr(info, name, None)
            if v:
                return int(v)
    except Exception:
        pass
    return 64 << 20


# ------------------------------- kernels -----------------------------------


def _gemm_bias_kernel(x_ref, w_ref, b_ref, o_ref, *, compute_dtype):
    # Single MXU pass, f32 accumulation, bias add in f32, cast on store.
    acc = jnp.dot(x_ref[...].astype(compute_dtype), w_ref[...],
                  preferred_element_type=jnp.float32)
    o_ref[...] = (acc + b_ref[...]).astype(o_ref.dtype)


def _gemm_bias_acc_kernel(x_ref, w_ref, b_ref, o_ref, acc_ref, *, compute_dtype):
    # K-tiled variant (very large C): accumulate partials in f32 VMEM scratch.
    k = pl.program_id(2)

    @pl.when(k == 0)
    def _():
        acc_ref[...] = jnp.zeros_like(acc_ref)

    acc_ref[...] += jnp.dot(x_ref[...].astype(compute_dtype), w_ref[...],
                            preferred_element_type=jnp.float32)

    @pl.when(k == pl.num_programs(2) - 1)
    def _():
        o_ref[...] = (acc_ref[...] + b_ref[...]).astype(o_ref.dtype)


# ---------------------------- tiling planner --------------------------------


def _footprint_bytes(tb, tn, tk, k_tiled, x_isz, w_isz, o_isz):
    f = 2 * tb * tk * x_isz          # x tile (double buffered)
    f += 2 * tk * tn * w_isz         # fused weight tile
    f += 2 * 8 * tn * 4              # bias tile (row padded to 8 sublanes), f32
    f += 2 * tb * tn * o_isz         # output tile
    if k_tiled:
        f += tb * tn * 4             # f32 accumulator scratch
    return f


def _plan_tiles(B, C, Cp, x_isz, w_isz, o_isz, sublane, vmem_cap):
    budget = int(vmem_cap * 0.75)    # leave headroom for compiler scratch

    # Batch tile: large enough to amortize per-step overhead, but at least two
    # grid steps when B allows so the "parallel" axis spans both v7x TCs.
    tb0 = min(1024, _round_up(max(_cdiv(B, 2), 1), sublane))
    tb0 = min(max(tb0, 8), _round_up(B, 8))
    tb_cands = [tb0] + [t for t in (512, 256, 128, 64, 32, 16, 8) if t < tb0]

    tn_cands = []
    for c in (Cp, 2048, 1024, 512, 256, 128):
        if c <= Cp and c not in tn_cands:
            tn_cands.append(c)

    # Preferred plan: weight K-resident; shrink/tile the output channels (N)
    # before shrinking the batch tile.
    for tb in tb_cands:
        for tn in tn_cands:
            if _footprint_bytes(tb, tn, C, False, x_isz, w_isz, o_isz) <= budget:
                return tb, tn, C, False

    # Very large C: also tile K with an f32 accumulator ("arbitrary" axis).
    if C % 128 == 0:
        tk_cands = [t for t in (2048, 1024, 512, 256, 128) if t < C and C % t == 0]
        for tk in tk_cands:
            for tb in tb_cands:
                for tn in tn_cands:
                    if _footprint_bytes(tb, tn, tk, True,
                                        x_isz, w_isz, o_isz) <= budget:
                        return tb, tn, tk, True
        if tk_cands:
            return tb_cands[-1], tn_cands[-1], tk_cands[-1], True

    # Nothing fit cleanly; fall back to the smallest K-resident plan.
    return tb_cands[-1], tn_cands[-1], C, False


# ------------------------------ public API ----------------------------------


def fold_cattention_params(w_kv, w_proj, b_proj, *, compute_dtype=jnp.float32):
    """Fold W_v and W_proj into one (C, Cp) weight + (1, Cp) f32 bias.

    Call ONCE at parameter-initialisation time (hoisted out of the forward).
    The fold is done in f32; only the final weight is cast to compute_dtype.
    """
    C = w_proj.shape[0]
    assert w_kv.shape == (2 * C, C)
    w_v = w_kv[C:, :]                                              # (C, C)
    # out = (x @ W_v^T) @ W_proj^T + b  ==  x @ (W_proj @ W_v)^T + b
    w_fused = jnp.dot(w_proj.astype(jnp.float32),
                      w_v.astype(jnp.float32)).T                    # (C, C) f32
    Cp = C if C % 128 == 0 else _round_up(C, 128)                   # lane-dense out
    bias = b_proj.astype(jnp.float32)
    if Cp != C:
        w_fused = jnp.pad(w_fused, ((0, 0), (0, Cp - C)))
        bias = jnp.pad(bias, (0, Cp - C))
    return w_fused.astype(compute_dtype), bias.reshape(1, Cp)


def cattention_fused_gemm(x_kv, w_fused, bias, *, compute_dtype=jnp.float32,
                          out_dtype=None):
    """out = x_kv @ w_fused + bias as a Pallas TPU kernel (weights pre-folded)."""
    B, C = x_kv.shape
    assert w_fused.shape[0] == C
    Cp = w_fused.shape[1]
    out_dtype = x_kv.dtype if out_dtype is None else out_dtype

    x_isz = jnp.dtype(x_kv.dtype).itemsize
    w_isz = jnp.dtype(w_fused.dtype).itemsize
    o_isz = jnp.dtype(out_dtype).itemsize
    bf16 = jnp.dtype(jnp.bfloat16)
    sublane = 16 if (jnp.dtype(compute_dtype) == bf16
                     or jnp.dtype(out_dtype) == bf16) else 8

    vmem_cap = _vmem_capacity_bytes()
    tb, tn, tk, k_tiled = _plan_tiles(B, C, Cp, x_isz, w_isz, o_isz,
                                      sublane, vmem_cap)
    n_b, n_n = _cdiv(B, tb), _cdiv(Cp, tn)

    footprint = _footprint_bytes(tb, tn, tk, k_tiled, x_isz, w_isz, o_isz)
    vmem_limit = int(min(vmem_cap, max(footprint + (4 << 20), 32 << 20)))

    cost = pl.CostEstimate(
        flops=2 * B * C * Cp,
        transcendentals=0,
        bytes_accessed=B * C * x_isz + C * Cp * w_isz + Cp * 4 + B * Cp * o_isz)

    if not k_tiled:
        out = pl.pallas_call(
            functools.partial(_gemm_bias_kernel, compute_dtype=compute_dtype),
            out_shape=jax.ShapeDtypeStruct((B, Cp), out_dtype),
            grid=(n_b, n_n),
            in_specs=[
                pl.BlockSpec((tb, C), lambda i, j: (i, 0)),   # x rows (pipelined)
                pl.BlockSpec((C, tn), lambda i, j: (0, j)),   # fused weight
                pl.BlockSpec((1, tn), lambda i, j: (0, j)),   # bias
            ],
            out_specs=pl.BlockSpec((tb, tn), lambda i, j: (i, j)),
            compiler_params=pltpu.CompilerParams(
                dimension_semantics=("parallel", "parallel"),
                vmem_limit_bytes=vmem_limit),
            cost_estimate=cost,
        )(x_kv, w_fused, bias)
    else:
        n_k = _cdiv(C, tk)
        out = pl.pallas_call(
            functools.partial(_gemm_bias_acc_kernel, compute_dtype=compute_dtype),
            out_shape=jax.ShapeDtypeStruct((B, Cp), out_dtype),
            grid=(n_b, n_n, n_k),
            in_specs=[
                pl.BlockSpec((tb, tk), lambda i, j, k: (i, k)),
                pl.BlockSpec((tk, tn), lambda i, j, k: (k, j)),
                pl.BlockSpec((1, tn), lambda i, j, k: (0, j)),
            ],
            out_specs=pl.BlockSpec((tb, tn), lambda i, j, k: (i, j)),
            scratch_shapes=[pltpu.VMEM((tb, tn), jnp.float32)],
            compiler_params=pltpu.CompilerParams(
                dimension_semantics=("parallel", "parallel", "arbitrary"),
                vmem_limit_bytes=vmem_limit),
            cost_estimate=cost,
        )(x_kv, w_fused, bias)

    if Cp != C:
        out = out[:, :C]   # slice only when real lane padding exists
    return out


def make_cattention(w_kv, w_q, w_proj, b_proj, num_heads, *,
                    compute_dtype=jnp.float32, out_dtype=None,
                    xla_fallback_max_elems=0):
    """Build a jitted CAttention forward; weights folded/padded/cast ONCE here.

    For N=1 the softmax over a single key is identically 1, so x_q / w_q cannot
    affect the output; they are accepted for interface parity only (NaN/Inf in
    x_q will therefore not propagate, unlike the PyTorch reference).
    Set xla_fallback_max_elems > 0 to dispatch tiny B*C shapes to plain XLA
    (per-step-overhead bound regime).
    """
    del w_q  # mathematically dead for N=1
    C = w_proj.shape[0]
    assert C % num_heads == 0, "dim should be divisible by num_heads"
    w_fused, bias = fold_cattention_params(w_kv, w_proj, b_proj,
                                           compute_dtype=compute_dtype)

    @jax.jit
    def forward(x_kv, x_q):
        del x_q  # dead path (softmax over N=1 is identically 1)
        B = x_kv.shape[0]
        if xla_fallback_max_elems and B * C <= xla_fallback_max_elems:
            out = jnp.dot(x_kv.astype(compute_dtype), w_fused,
                          preferred_element_type=jnp.float32) + bias
            if w_fused.shape[1] != C:
                out = out[:, :C]
            return out.astype(out_dtype if out_dtype is not None else x_kv.dtype)
        return cattention_fused_gemm(x_kv, w_fused, bias,
                                     compute_dtype=compute_dtype,
                                     out_dtype=out_dtype)

    return forward


# ------------------------------ reference -----------------------------------


def cattention_ref(x_kv, x_q, w_kv, w_q, w_proj, b_proj, num_heads):
    """Pure-JAX mirror of the PyTorch forward (for validation)."""
    B, C = x_kv.shape
    N = 1
    hd = C // num_heads
    scale = float(hd) ** -0.5
    kv = (x_kv @ w_kv.T).reshape(B, N, 2, num_heads, hd).transpose(2, 0, 3, 1, 4)
    k, v = kv[0], kv[1]                                  # (B, H, N, hd)
    q = (x_q @ w_q.T).reshape(B, N, num_heads, hd).transpose(0, 2, 1, 3)
    attn = (q @ jnp.swapaxes(k, -2, -1)) * scale         # (B, H, N, N)
    attn = jax.nn.softmax(attn, axis=-1)
    x = (attn @ v).transpose(0, 2, 1, 3).reshape(B, N, C)
    x = x @ w_proj.T + b_proj
    return x.reshape(B, -1)


# --------------------------------- test --------------------------------------


if __name__ == "__main__":
    keys = jax.random.split(jax.random.PRNGKey(0), 12)

    def make_params(ks, C):
        w_kv = jax.random.normal(ks[0], (2 * C, C), jnp.float32) * 0.05
        w_q = jax.random.normal(ks[1], (C, C), jnp.float32) * 0.05
        w_proj = jax.random.normal(ks[2], (C, C), jnp.float32) * 0.05
        b_proj = jax.random.normal(ks[3], (C,), jnp.float32) * 0.05
        return w_kv, w_q, w_proj, b_proj

    # --- Case 1: dim=32, heads=8 (C % 128 != 0 -> lane-padded output path) ---
    B, C, H = 8, 32, 8
    x_kv = jax.random.normal(keys[0], (B, C), jnp.float32)
    x_q = jax.random.normal(keys[1], (B, C), jnp.float32)
    w_kv, w_q, w_proj, b_proj = make_params(keys[2:6], C)
    ref = cattention_ref(x_kv, x_q, w_kv, w_q, w_proj, b_proj, H)

    fwd = make_cattention(w_kv, w_q, w_proj, b_proj, H, compute_dtype=jnp.float32)
    out = jax.block_until_ready(fwd(x_kv, x_q))
    np.testing.assert_allclose(np.asarray(out), np.asarray(ref),
                               rtol=1e-4, atol=1e-5)

    fwd_bf16 = make_cattention(w_kv, w_q, w_proj, b_proj, H,
                               compute_dtype=jnp.bfloat16)
    out_bf16 = jax.block_until_ready(fwd_bf16(x_kv, x_q))
    np.testing.assert_allclose(np.asarray(out_bf16), np.asarray(ref),
                               rtol=5e-2, atol=1e-2)

    # --- Case 2: dim=128 (C % 128 == 0 -> no pad/slice), ragged batch grid ----
    B2, C2, H2 = 40, 128, 8
    x_kv2 = jax.random.normal(keys[6], (B2, C2), jnp.float32)
    x_q2 = jax.random.normal(keys[7], (B2, C2), jnp.float32)
    w_kv2, w_q2, w_proj2, b_proj2 = make_params(keys[8:12], C2)
    ref2 = cattention_ref(x_kv2, x_q2, w_kv2, w_q2, w_proj2, b_proj2, H2)

    fwd2 = make_cattention(w_kv2, w_q2, w_proj2, b_proj2, H2,
                           compute_dtype=jnp.float32)
    out2 = jax.block_until_ready(fwd2(x_kv2, x_q2))
    np.testing.assert_allclose(np.asarray(out2), np.asarray(ref2),
                               rtol=1e-3, atol=1e-4)

    print("KERNEL_OK")
</pallas_src>

<mosaic_0001>
module attributes {stable_mosaic.version = 11 : i64} {
  func.func @_gemm_bias_kernel(%arg0: i32, %arg1: i32, %arg2: memref<8x32xf32, #tpu.memory_space<vmem>>, %arg3: memref<32x128xf32, #tpu.memory_space<vmem>>, %arg4: memref<1x128xf32, #tpu.memory_space<vmem>>, %arg5: memref<8x128xf32, #tpu.memory_space<vmem>>) attributes {dimension_semantics = [#tpu.dimension_semantics<parallel>, #tpu.dimension_semantics<parallel>], iteration_bounds = array<i64: 1, 1>, scalar_prefetch = 0 : i64, scratch_operands = 0 : i64, tpu.core_type = #tpu.core_type<tc>, window_params = [{transform_indices = @transform_0, window_bounds = array<i64: 8, 32>}, {transform_indices = @transform_1, window_bounds = array<i64: 32, 128>}, {transform_indices = @transform_2, window_bounds = array<i64: 1, 128>}, {transform_indices = @transform_3, window_bounds = array<i64: 8, 128>}]} {
    %c0 = arith.constant 0 : index
    %c0_0 = arith.constant 0 : index
    %0 = vector.load %arg2[%c0, %c0_0] : memref<8x32xf32, #tpu.memory_space<vmem>>, vector<8x32xf32>
    %c0_1 = arith.constant 0 : index
    %c0_2 = arith.constant 0 : index
    %1 = vector.load %arg3[%c0_1, %c0_2] : memref<32x128xf32, #tpu.memory_space<vmem>>, vector<32x128xf32>
    %cst = arith.constant dense<0.000000e+00> : vector<8x128xf32>
    %2 = tpu.matmul %0, %1, %cst {dimension_numbers = #tpu.dot_dimension_numbers<[1], [0], [0], [1], [0, 0, 1, 1], [], []>} : vector<8x32xf32>, vector<32x128xf32>, vector<8x128xf32> -> vector<8x128xf32>
    %c0_3 = arith.constant 0 : index
    %c0_4 = arith.constant 0 : index
    %3 = vector.load %arg4[%c0_3, %c0_4] : memref<1x128xf32, #tpu.memory_space<vmem>>, vector<1x128xf32>
    %4 = vector.broadcast %3 : vector<1x128xf32> to vector<8x128xf32>
    %5 = arith.addf %2, %4 : vector<8x128xf32>
    %c0_5 = arith.constant 0 : index
    %c0_6 = arith.constant 0 : index
    %6 = vector.load %arg5[%c0_5, %c0_6] : memref<8x128xf32, #tpu.memory_space<vmem>>, vector<8x128xf32>
    tpu.vector_store %arg5[%c0_5, %c0_6], %5 {strides = array<i32>} : memref<8x128xf32, #tpu.memory_space<vmem>>, vector<8x128xf32>,
    return
  }
  func.func @transform_0(%arg0: i32, %arg1: i32) -> (i32, i32) {
    %c0_i32 = arith.constant 0 : i32
    %c0_i32_0 = arith.constant 0 : i32
    return %arg0, %c0_i32 : i32, i32
  }
  func.func @transform_1(%arg0: i32, %arg1: i32) -> (i32, i32) {
    %c0_i32 = arith.constant 0 : i32
    %c0_i32_0 = arith.constant 0 : i32
    return %c0_i32, %arg1 : i32, i32
  }
  func.func @transform_2(%arg0: i32, %arg1: i32) -> (i32, i32) {
    %c0_i32 = arith.constant 0 : i32
    %c0_i32_0 = arith.constant 0 : i32
    return %c0_i32, %arg1 : i32, i32
  }
  func.func @transform_3(%arg0: i32, %arg1: i32) -> (i32, i32) {
    %c0_i32 = arith.constant 0 : i32
    return %arg0, %arg1 : i32, i32
  }
}

</mosaic_0001>

<llo_original>
// kernel: forward.1
$region0: #{forward.1}
  #allocation0 [shape = 'u32[]', space=smem, size = 0x4, offset = 0x4, fixed_abs, tag = 'smem constant byte address 0x4 - core index']
  #allocation1 [shape = 'u32[72,128]{1,0:T(1,128)}', space=vmem, size = 0x9000, scoped, tag = 'internal scratch']
  %s0 = inlined_call_operand.hbm [shape: f32[8,32], index: 0, kind: input, shape index: {}]
  %s1 = inlined_call_operand.hbm [shape: f32[32,128], index: 1, kind: input, shape index: {}]
  %s2 = inlined_call_operand.vmem [shape: f32[1,128], index: 2, kind: input, shape index: {}]
  %s3 = inlined_call_operand.hbm [shape: f32[8,128], index: 3, kind: output, shape index: {}]
  %s4 = sld [smem:[#allocation0]]
  $region30: #{forward.1} parent=0
    _
  %s6 = ssub.s32 1, %s4
  %s7 = scalar_select 0, %s6, %s4
  $region1: #{forward.1} parent=0
    #allocation2 [shape = 'u8[4096]{0}', space=vmem, size = 0x1000, scoped, tag = 'input window, operand 0, single buffered']
    #allocation3 [shape = 's32[1]{0}', space=sflag, size = 0x4, scoped, tag = 'scoped memory for forward.1']
    #allocation4 [shape = 's32[1]{0}', space=sflag, size = 0x4, scoped, tag = 'scoped memory for forward.1']
    #allocation5 [shape = 'u8[16384]{0}', space=vmem, size = 0x4000, scoped, tag = 'input window, operand 1, single buffered']
    #allocation6 [shape = 's32[1]{0}', space=sflag, size = 0x4, scoped, tag = 'scoped memory for forward.1']
    #allocation7 [shape = 'u8[4096]{0}', space=vmem, size = 0x1000, scoped, tag = 'output window, operand 0, single buffered']
    %8 = vsyncpa [#allocation3], 0
    %9 = vsyncpa [#allocation6], 0
    %10 = vsyncpa [#allocation4], 0
    // Predicated region
    $region2: #{forward.1} parent=1 // pred_check
      _
    $region3: #{forward.1} parent=1 // pred_check_branch
      %12 = sbr.rel (0) target = $region5
    $region4: #{forward.1} parent=1 // pred_region
      %14 = vsyncadd [#allocation3], 0
      %s16 = sshll.u32 %s0, 4
      %s17 = int_to_ptr.hbm [resolvable:$true] %s16
      %s18 = sshll.u32 [#allocation2], 4
      %s19 = int_to_ptr.vmem [resolvable:$true] %s18
      %21 = dma.hbm_to_vmem [thread:$0]  %s17, 128, %s19, [#allocation3]
    $region5: #{forward.1} parent=1 // pred_fallthru
      _
    // Predicated region
    $region6: #{forward.1} parent=1 // pred_check
      _
    $region7: #{forward.1} parent=1 // pred_check_branch
      %23 = sbr.rel (0) target = $region9
    $region8: #{forward.1} parent=1 // pred_region
      %25 = vsyncadd [#allocation6], 0
      %s26 = sshll.u32 %s1, 4
      %s27 = int_to_ptr.hbm [resolvable:$true] %s26
      %s28 = sshll.u32 [#allocation5], 4
      %s29 = int_to_ptr.vmem [resolvable:$true] %s28
      %34 = dma.hbm_to_vmem [thread:$0]  %s27, 512, %s29, [#allocation6], 128, 128, 8
    $region9: #{forward.1} parent=1 // pred_fallthru
      _
    // Predicated region
    $region10: #{forward.1} parent=1 // pred_check
      _
    $region11: #{forward.1} parent=1 // pred_check_branch
      %36 = sbr.rel (0) target = $region13
    $region12: #{forward.1} parent=1 // pred_region
      _
    $region13: #{forward.1} parent=1 // pred_fallthru
      _
    // Predicated region
    $region14: #{forward.1} parent=1 // pred_check
      _
    $region15: #{forward.1} parent=1 // pred_check_branch
      %38 = sbr.rel (0) target = $region17
    $region16: #{forward.1} parent=1 // pred_region
      %40 = dma.done [#allocation3], 128
    $region17: #{forward.1} parent=1 // pred_fallthru
      _
    // Predicated region
    $region18: #{forward.1} parent=1 // pred_check
      _
    $region19: #{forward.1} parent=1 // pred_check_branch
      %42 = sbr.rel (0) target = $region21
    $region20: #{forward.1} parent=1 // pred_region
      %44 = dma.done [#allocation6], 512
    $region21: #{forward.1} parent=1 // pred_fallthru
      _
    %v45 = vld [vmem:[#allocation2] sm:$0xff]
    %v46 = vld [vmem:[#allocation5] sm:$0xff]
    %v47 = vld [vmem:[#allocation5 + $0x8] sm:$0xff]
    %v48 = vld [vmem:[#allocation5 + $0x10] sm:$0xff]
    %v49 = vld [vmem:[#allocation5 + $0x18] sm:$0xff]
    %v50 = vld [vmem:[%s2] sm:$0x1]
    %v52 = vperm.slane %v50, 0
    %vm54 = vcmask 261120
    %v56 = vsel %vm54, %v45, 0
    %58 = vmatpush.msra.mxu0 0.0
    %59 = vmatpush.msra.mxu0 0.0
    %60 = vmatpush.msra.mxu0 0.0
    %61 = vmatpush.msra.mxu0 0.0
    %62 = vmatpush.msra.mxu0 0.0
    %63 = vmatpush.msra.mxu0 0.0
    %64 = vmatpush.msra.mxu0 0.0
    %65 = vmatpush.msra.mxu0 0.0
    %66 = vmatpush.msra.mxu0 0.0
    %67 = vmatpush.msra.mxu0 0.0
    %68 = vmatpush.msra.mxu0 0.0
    %69 = vmatpush.msra.mxu0 0.0
    %70 = vmatpush.msra.mxu0 %v49
    %71 = vmatpush.msra.mxu0 %v48
    %72 = vmatpush.msra.mxu0 %v47
    %73 = vmatpush.msra.mxu0 %v46
    %74 = vmatmul.f32.gmra.mxu0 %v56
    %v75 = vpop.f32.mrf.mxu0
    %v76 = vadd.f32 %v52, %v75
    %77 = vdwg.mxu0
    %78 = vst [vmem:[#allocation7] sm:$0xff] %v76
    // Predicated region
    $region22: #{forward.1} parent=1 // pred_check
      _
    $region23: #{forward.1} parent=1 // pred_check_branch
      %80 = sbr.rel (0) target = $region25
    $region24: #{forward.1} parent=1 // pred_region
      %82 = vsyncadd [#allocation4], 0
      %s84 = sshll.u32 [#allocation7], 4
      %s85 = int_to_ptr.vmem [resolvable:$true] %s84
      %s86 = sshll.u32 %s3, 4
      %s87 = int_to_ptr.hbm [resolvable:$true] %s86
      %89 = dma.vmem_to_hbm [thread:$0]  %s85, 128, %s87, [#allocation4]
    $region25: #{forward.1} parent=1 // pred_fallthru
      _
    // Predicated region
    $region26: #{forward.1} parent=1 // pred_check
      _
    $region27: #{forward.1} parent=1 // pred_check_branch
      %91 = sbr.rel (0) target = $region29
    $region28: #{forward.1} parent=1 // pred_region
      %93 = dma.done [#allocation4], 128
    $region29: #{forward.1} parent=1 // pred_fallthru
      _
    %94 = vsyncpa [#allocation3], 1
    %95 = vsyncpa [#allocation6], 1
    %96 = vsyncpa [#allocation4], 1

</llo_original>
